<compile_context>
chip_gen: v6e
topology: v6e:2x2x1
jax: 0.10.0
libtpu: 0.0.40
codegen_flags: <defaults>
</compile_context>

<pallas_src>
import functools

import jax
import jax.numpy as jnp
from jax.experimental import pallas as pl
from jax.experimental.pallas import tpu as pltpu


# ----------------------------------------------------------------------------
# Helpers
# ----------------------------------------------------------------------------
def _contributing_taps(H, W, Ho, Wo, KH, KW, pad, dil):
    """Taps whose receptive field intersects the real (unpadded) input."""
    taps = []
    for kh in range(KH):
        dh = kh * dil - pad
        if dh <= -Ho or dh >= H:      # reads only zero padding -> skip
            continue
        for kw in range(KW):
            dw = kw * dil - pad
            if dw <= -Wo or dw >= W:
                continue
            taps.append((kh, kw, dh, dw))
    return taps


def _shifted_slab_nchw(x_nchw, dh, dw, Ho, Wo):
    """slab[n, c, oh, ow] = x[n, c, oh+dh, ow+dw] if in bounds else 0 (NCHW)."""
    N, C, H, W = x_nchw.shape
    if dh == 0 and dw == 0 and Ho == H and Wo == W:
        return x_nchw
    ph_lo, ph_hi = max(0, -dh), max(0, dh + Ho - H)
    pw_lo, pw_hi = max(0, -dw), max(0, dw + Wo - W)
    xp = jnp.pad(x_nchw, ((0, 0), (0, 0), (ph_lo, ph_hi), (pw_lo, pw_hi)))
    return xp[:, :, dh + ph_lo: dh + ph_lo + Ho, dw + pw_lo: dw + pw_lo + Wo]


# ----------------------------------------------------------------------------
# Fused kernel: conv (transposed GEMM) + BatchNorm (batch stats) + ReLU.
#   Grid = (T taps, N batch); output (N, Cout, HW) is VMEM-resident across the
#   whole grid and flushed to HBM once at the end.
#   x_ref:(Cin, HW) bf16   w_ref:(Cout, Cin) bf16
#   gamma/beta:(1, Cout, 1) f32   o_ref:(N, Cout, HW) f32
# ----------------------------------------------------------------------------
def _make_fused_kernel(inv_count, eps):
    def kernel(x_ref, w_ref, gamma_ref, beta_ref, o_ref):
        t = pl.program_id(0)
        n = pl.program_id(1)

        y = jnp.dot(w_ref[...], x_ref[...],
                    preferred_element_type=jnp.float32)        # (Cout, HW)

        @pl.when(t == 0)
        def _first_tap():
            o_ref[n] = y

        @pl.when(t != 0)
        def _accumulate_tap():
            o_ref[n] += y

        is_last = jnp.logical_and(t == pl.num_programs(0) - 1,
                                  n == pl.num_programs(1) - 1)

        @pl.when(is_last)
        def _bn_relu_epilogue():
            y_all = o_ref[...]                                  # (N, Cout, HW)
            s = jnp.sum(y_all, axis=2, keepdims=True)           # lane reduce
            mean = jnp.sum(s, axis=0, keepdims=True) * inv_count  # (1, Cout, 1)
            c = y_all - mean
            ss = jnp.sum(c * c, axis=2, keepdims=True)
            var = jnp.sum(ss, axis=0, keepdims=True) * inv_count  # biased var
            scale = gamma_ref[...] * jax.lax.rsqrt(var + eps)
            o_ref[...] = jnp.maximum(c * scale + beta_ref[...],
                                     0.0).astype(o_ref.dtype)
    return kernel


# ----------------------------------------------------------------------------
# Wrapper: NCHW in / NCHW out (PyTorch semantics), no layout transposes.
# ----------------------------------------------------------------------------
@functools.partial(jax.jit, static_argnames=("pad", "dil", "eps"))
def conv_bn_relu(x_nchw, w_oihw, gamma, beta, *, pad, dil, eps=1e-5):
    N, Cin, H, W = x_nchw.shape
    Cout, _, KH, KW = w_oihw.shape
    Ho = H + 2 * pad - dil * (KH - 1)
    Wo = W + 2 * pad - dil * (KW - 1)
    HW = Ho * Wo
    M = N * HW

    taps = _contributing_taps(H, W, Ho, Wo, KH, KW, pad, dil)
    assert taps, "no kernel tap overlaps the input"

    centre_only = (len(taps) == 1 and taps[0][2] == 0 and taps[0][3] == 0
                   and Ho == H and Wo == W)
    if centre_only:
        # Real-module fast path: zero-copy reshape of the NCHW input, one tap.
        kh, kw, _, _ = taps[0]
        x_taps = x_nchw.reshape(1, N, Cin, HW).astype(jnp.bfloat16)
        w_taps = w_oihw[:, :, kh, kw].reshape(1, Cout, Cin).astype(jnp.bfloat16)
    else:
        # General (rare) path: per-tap shifted slabs, streamed over a tap grid
        # axis (no giant concatenated im2col matrix inside the kernel).
        x_list, w_list = [], []
        for kh, kw, dh, dw in taps:
            slab = _shifted_slab_nchw(x_nchw, dh, dw, Ho, Wo)   # (N,Cin,Ho,Wo)
            x_list.append(slab.reshape(N, Cin, HW))
            w_list.append(w_oihw[:, :, kh, kw])
        x_taps = jnp.stack(x_list, axis=0).astype(jnp.bfloat16)  # (T,N,Cin,HW)
        w_taps = jnp.stack(w_list, axis=0).astype(jnp.bfloat16)  # (T,Cout,Cin)
    T = x_taps.shape[0]

    # VMEM budget check (fused kernel keeps the whole conv output resident).
    # Real module: 2*(3.2MB + 1MB) + 2*0.8MB + slack ~= 11 MB << 44 MB.
    est_vmem = 2 * (Cin * HW * 2 + Cout * Cin * 2) + 2 * (N * Cout * HW * 4) \
        + (2 << 20)
    assert est_vmem <= 44 * 1024 * 1024, (
        "problem too large for the fused single-pass kernel", est_vmem)

    gamma3 = gamma.reshape(1, Cout, 1).astype(jnp.float32)
    beta3 = beta.reshape(1, Cout, 1).astype(jnp.float32)

    out = pl.pallas_call(
        _make_fused_kernel(1.0 / float(M), float(eps)),
        out_shape=jax.ShapeDtypeStruct((N, Cout, HW), jnp.float32),
        grid=(T, N),
        in_specs=[
            pl.BlockSpec((None, None, Cin, HW), lambda t, n: (t, n, 0, 0)),
            pl.BlockSpec((None, Cout, Cin), lambda t, n: (t, 0, 0)),
            pl.BlockSpec((1, Cout, 1), lambda t, n: (0, 0, 0)),
            pl.BlockSpec((1, Cout, 1), lambda t, n: (0, 0, 0)),
        ],
        out_specs=pl.BlockSpec((N, Cout, HW), lambda t, n: (0, 0, 0)),
        compiler_params=pltpu.CompilerParams(
            dimension_semantics=("arbitrary", "arbitrary"),
            vmem_limit_bytes=48 * 1024 * 1024),
    )(x_taps, w_taps, gamma3, beta3)

    # Output is already channel-major: (N, Cout, HW) -> (N, Cout, Ho, Wo).
    return out.reshape(N, Cout, Ho, Wo)


# ----------------------------------------------------------------------------
# Pure-JAX f32 reference.
# ----------------------------------------------------------------------------
def _reference(x_nchw, w_oihw, gamma, beta, pad, dil, eps=1e-5):
    y = jax.lax.conv_general_dilated(
        x_nchw, w_oihw,
        window_strides=(1, 1),
        padding=[(pad, pad), (pad, pad)],
        rhs_dilation=(dil, dil),
        dimension_numbers=("NCHW", "OIHW", "NCHW"),
        precision=jax.lax.Precision.HIGHEST,
    )
    mean = y.mean(axis=(0, 2, 3), keepdims=True)
    var = ((y - mean) ** 2).mean(axis=(0, 2, 3), keepdims=True)
    g = gamma.reshape(1, -1, 1, 1)
    b = beta.reshape(1, -1, 1, 1)
    return jnp.maximum((y - mean) * jax.lax.rsqrt(var + eps) * g + b, 0.0)


if __name__ == "__main__":
    eps = 1e-5
    key = jax.random.PRNGKey(0)

    def make_inputs(k, N, Cin, Cout, H, W, KH=3, KW=3):
        kx, kw, kg, kb = jax.random.split(k, 4)
        x = jax.random.normal(kx, (N, Cin, H, W), jnp.float32)
        w = jax.random.normal(kw, (Cout, Cin, KH, KW), jnp.float32) / jnp.sqrt(
            Cin * KH * KW)
        # Pre-round to bf16 so the kernel's bf16 cast is lossless and the
        # comparison against the f32 reference is tight.
        x = x.astype(jnp.bfloat16).astype(jnp.float32)
        w = w.astype(jnp.bfloat16).astype(jnp.float32)
        gamma = 1.0 + 0.1 * jax.random.normal(kg, (Cout,), jnp.float32)
        beta = 0.1 * jax.random.normal(kb, (Cout,), jnp.float32)
        return x, w, gamma, beta

    cases = [
        # Mirrors the real module geometry (pad == dil == 36 > H, so only the
        # centre tap contributes), scaled down from (1, 2048, 28, 28)/Cout=256.
        dict(N=1, Cin=256, Cout=128, H=16, W=16, pad=36, dil=36),
        # General path: all 9 taps partially overlap the input.
        dict(N=2, Cin=64, Cout=128, H=8, W=8, pad=2, dil=2),
    ]

    for i, c in enumerate(cases):
        key, sub = jax.random.split(key)
        x, w, gamma, beta = make_inputs(sub, c["N"], c["Cin"], c["Cout"],
                                        c["H"], c["W"])
        out = conv_bn_relu(x, w, gamma, beta, pad=c["pad"], dil=c["dil"], eps=eps)
        out = jax.block_until_ready(out)

        ref = _reference(x, w, gamma, beta, c["pad"], c["dil"], eps)
        Ho = c["H"] + 2 * c["pad"] - 2 * c["dil"]
        Wo = c["W"] + 2 * c["pad"] - 2 * c["dil"]
        assert out.shape == (c["N"], c["Cout"], Ho, Wo), out.shape
        err = float(jnp.max(jnp.abs(out - ref)))
        assert jnp.allclose(out, ref, rtol=2e-3, atol=2e-3), (i, err)

    print("KERNEL_OK")
</pallas_src>

<mosaic_0001>
module attributes {stable_mosaic.version = 11 : i64} {
  func.func @kernel(%arg0: i32, %arg1: i32, %arg2: memref<1x1x256x256xbf16, #tpu.memory_space<vmem>>, %arg3: memref<1x128x256xbf16, #tpu.memory_space<vmem>>, %arg4: memref<1x128x1xf32, #tpu.memory_space<vmem>>, %arg5: memref<1x128x1xf32, #tpu.memory_space<vmem>>, %arg6: memref<1x128x256xf32, #tpu.memory_space<vmem>>) attributes {dimension_semantics = [#tpu.dimension_semantics<arbitrary>, #tpu.dimension_semantics<arbitrary>], iteration_bounds = array<i64: 1, 1>, scalar_prefetch = 0 : i64, scratch_operands = 0 : i64, tpu.core_type = #tpu.core_type<tc>, window_params = [{transform_indices = @transform_0, window_bounds = array<i64: 1, 1, 256, 256>}, {transform_indices = @transform_1, window_bounds = array<i64: 1, 128, 256>}, {pipeline_mode = #tpu.pipeline_mode<synchronous>, transform_indices = @transform_2, window_bounds = array<i64: 1, 128, 1>}, {pipeline_mode = #tpu.pipeline_mode<synchronous>, transform_indices = @transform_3, window_bounds = array<i64: 1, 128, 1>}, {pipeline_mode = #tpu.pipeline_mode<synchronous>, transform_indices = @transform_4, window_bounds = array<i64: 1, 128, 256>}]} {
    %c0 = arith.constant 0 : index
    %c0_0 = arith.constant 0 : index
    %c0_1 = arith.constant 0 : index
    %0 = vector.load %arg3[%c0, %c0_0, %c0_1] : memref<1x128x256xbf16, #tpu.memory_space<vmem>>, vector<1x128x256xbf16>
    %1 = vector.shape_cast %0 : vector<1x128x256xbf16> to vector<128x256xbf16>
    %c0_2 = arith.constant 0 : index
    %c0_3 = arith.constant 0 : index
    %c0_4 = arith.constant 0 : index
    %c0_5 = arith.constant 0 : index
    %2 = vector.load %arg2[%c0_2, %c0_3, %c0_4, %c0_5] : memref<1x1x256x256xbf16, #tpu.memory_space<vmem>>, vector<1x1x256x256xbf16>
    %3 = vector.shape_cast %2 : vector<1x1x256x256xbf16> to vector<256x256xbf16>
    %cst = arith.constant dense<0.000000e+00> : vector<128x256xf32>
    %4 = tpu.matmul %1, %3, %cst {dimension_numbers = #tpu.dot_dimension_numbers<[1], [0], [0], [1], [0, 0, 1, 1], [], []>} : vector<128x256xbf16>, vector<256x256xbf16>, vector<128x256xf32> -> vector<128x256xf32>
    %c0_i32 = arith.constant 0 : i32
    %5 = arith.cmpi eq, %arg0, %c0_i32 : i32
    %6 = arith.extui %5 : i1 to i32
    %c0_i32_6 = arith.constant 0 : i32
    %7 = arith.cmpi ne, %6, %c0_i32_6 : i32
    scf.if %7 {
      %16 = arith.index_cast %arg1 : i32 to index
      %c0_12 = arith.constant 0 : index
      %c0_13 = arith.constant 0 : index
      %17 = vector.load %arg6[%16, %c0_12, %c0_13] : memref<1x128x256xf32, #tpu.memory_space<vmem>>, vector<1x128x256xf32>
      %18 = vector.shape_cast %17 : vector<1x128x256xf32> to vector<128x256xf32>
      %19 = vector.shape_cast %4 : vector<128x256xf32> to vector<1x128x256xf32>
      tpu.vector_store %arg6[%16, %c0_12, %c0_13], %19 {strides = array<i32>} : memref<1x128x256xf32, #tpu.memory_space<vmem>>, vector<1x128x256xf32>,
    } else {
    }
    %c0_i32_7 = arith.constant 0 : i32
    %8 = arith.cmpi ne, %arg0, %c0_i32_7 : i32
    %9 = arith.extui %8 : i1 to i32
    %c0_i32_8 = arith.constant 0 : i32
    %10 = arith.cmpi ne, %9, %c0_i32_8 : i32
    scf.if %10 {
      %16 = arith.index_cast %arg1 : i32 to index
      %c0_12 = arith.constant 0 : index
      %c0_13 = arith.constant 0 : index
      %17 = vector.load %arg6[%16, %c0_12, %c0_13] : memref<1x128x256xf32, #tpu.memory_space<vmem>>, vector<1x128x256xf32>
      %18 = vector.shape_cast %17 : vector<1x128x256xf32> to vector<128x256xf32>
      %19 = arith.addf %18, %4 : vector<128x256xf32>
      %20 = arith.index_cast %arg1 : i32 to index
      %c0_14 = arith.constant 0 : index
      %c0_15 = arith.constant 0 : index
      %21 = vector.load %arg6[%20, %c0_14, %c0_15] : memref<1x128x256xf32, #tpu.memory_space<vmem>>, vector<1x128x256xf32>
      %22 = vector.shape_cast %21 : vector<1x128x256xf32> to vector<128x256xf32>
      %23 = vector.shape_cast %19 : vector<128x256xf32> to vector<1x128x256xf32>
      tpu.vector_store %arg6[%20, %c0_14, %c0_15], %23 {strides = array<i32>} : memref<1x128x256xf32, #tpu.memory_space<vmem>>, vector<1x128x256xf32>,
    } else {
    }
    %c0_i32_9 = arith.constant 0 : i32
    %11 = arith.cmpi eq, %arg0, %c0_i32_9 : i32
    %c0_i32_10 = arith.constant 0 : i32
    %12 = arith.cmpi eq, %arg1, %c0_i32_10 : i32
    %13 = arith.andi %11, %12 : i1
    %14 = arith.extui %13 : i1 to i32
    %c0_i32_11 = arith.constant 0 : i32
    %15 = arith.cmpi ne, %14, %c0_i32_11 : i32
    scf.if %15 {
      %c0_12 = arith.constant 0 : index
      %c0_13 = arith.constant 0 : index
      %c0_14 = arith.constant 0 : index
      %16 = vector.load %arg6[%c0_12, %c0_13, %c0_14] : memref<1x128x256xf32, #tpu.memory_space<vmem>>, vector<1x128x256xf32>
      %cst_15 = arith.constant dense<0.000000e+00> : vector<1x128xf32>
      %17 = vector.multi_reduction <add>, %16, %cst_15 [2] : vector<1x128x256xf32> to vector<1x128xf32>
      %18 = vector.shape_cast %17 : vector<1x128xf32> to vector<1x128x1xf32>
      %cst_16 = arith.constant dense<0.000000e+00> : vector<128x1xf32>
      %19 = vector.multi_reduction <add>, %18, %cst_16 [0] : vector<1x128x1xf32> to vector<128x1xf32>
      %20 = vector.shape_cast %19 : vector<128x1xf32> to vector<1x128x1xf32>
      %cst_17 = arith.constant 3.906250e-03 : f32
      %21 = vector.broadcast %cst_17 : f32 to vector<1x128x1xf32>
      %22 = arith.mulf %20, %21 : vector<1x128x1xf32>
      %23 = vector.broadcast %22 : vector<1x128x1xf32> to vector<1x128x256xf32>
      %24 = arith.subf %16, %23 : vector<1x128x256xf32>
      %25 = arith.mulf %24, %24 : vector<1x128x256xf32>
      %cst_18 = arith.constant dense<0.000000e+00> : vector<1x128xf32>
      %26 = vector.multi_reduction <add>, %25, %cst_18 [2] : vector<1x128x256xf32> to vector<1x128xf32>
      %27 = vector.shape_cast %26 : vector<1x128xf32> to vector<1x128x1xf32>
      %cst_19 = arith.constant dense<0.000000e+00> : vector<128x1xf32>
      %28 = vector.multi_reduction <add>, %27, %cst_19 [0] : vector<1x128x1xf32> to vector<128x1xf32>
      %29 = vector.shape_cast %28 : vector<128x1xf32> to vector<1x128x1xf32>
      %cst_20 = arith.constant 3.906250e-03 : f32
      %30 = vector.broadcast %cst_20 : f32 to vector<1x128x1xf32>
      %31 = arith.mulf %29, %30 : vector<1x128x1xf32>
      %c0_21 = arith.constant 0 : index
      %c0_22 = arith.constant 0 : index
      %c0_23 = arith.constant 0 : index
      %32 = vector.load %arg4[%c0_21, %c0_22, %c0_23] : memref<1x128x1xf32, #tpu.memory_space<vmem>>, vector<1x128x1xf32>
      %cst_24 = arith.constant 9.99999974E-6 : f32
      %33 = vector.broadcast %cst_24 : f32 to vector<1x128x1xf32>
      %34 = arith.addf %31, %33 : vector<1x128x1xf32>
      %35 = math.rsqrt %34 : vector<1x128x1xf32>
      %36 = arith.mulf %32, %35 : vector<1x128x1xf32>
      %37 = vector.broadcast %36 : vector<1x128x1xf32> to vector<1x128x256xf32>
      %38 = arith.mulf %24, %37 : vector<1x128x256xf32>
      %c0_25 = arith.constant 0 : index
      %c0_26 = arith.constant 0 : index
      %c0_27 = arith.constant 0 : index
      %39 = vector.load %arg5[%c0_25, %c0_26, %c0_27] : memref<1x128x1xf32, #tpu.memory_space<vmem>>, vector<1x128x1xf32>
      %40 = vector.broadcast %39 : vector<1x128x1xf32> to vector<1x128x256xf32>
      %41 = arith.addf %38, %40 : vector<1x128x256xf32>
      %cst_28 = arith.constant 0.000000e+00 : f32
      %42 = vector.broadcast %cst_28 : f32 to vector<1x128x256xf32>
      %43 = arith.maximumf %41, %42 : vector<1x128x256xf32>
      %c0_29 = arith.constant 0 : index
      %c0_30 = arith.constant 0 : index
      %c0_31 = arith.constant 0 : index
      %44 = vector.load %arg6[%c0_29, %c0_30, %c0_31] : memref<1x128x256xf32, #tpu.memory_space<vmem>>, vector<1x128x256xf32>
      tpu.vector_store %arg6[%c0_29, %c0_30, %c0_31], %43 {strides = array<i32>} : memref<1x128x256xf32, #tpu.memory_space<vmem>>, vector<1x128x256xf32>,
    } else {
    }
    return
  }
  func.func @transform_0(%arg0: i32, %arg1: i32) -> (i32, i32, i32, i32) {
    %c0_i32 = arith.constant 0 : i32
    %c0_i32_0 = arith.constant 0 : i32
    %c0_i32_1 = arith.constant 0 : i32
    return %arg0, %arg1, %c0_i32, %c0_i32_0 : i32, i32, i32, i32
  }
  func.func @transform_1(%arg0: i32, %arg1: i32) -> (i32, i32, i32) {
    %c0_i32 = arith.constant 0 : i32
    %c0_i32_0 = arith.constant 0 : i32
    %c0_i32_1 = arith.constant 0 : i32
    return %arg0, %c0_i32, %c0_i32_0 : i32, i32, i32
  }
  func.func @transform_2(%arg0: i32, %arg1: i32) -> (i32, i32, i32) {
    %c0_i32 = arith.constant 0 : i32
    %c0_i32_0 = arith.constant 0 : i32
    %c0_i32_1 = arith.constant 0 : i32
    %c0_i32_2 = arith.constant 0 : i32
    return %c0_i32, %c0_i32_0, %c0_i32_1 : i32, i32, i32
  }
  func.func @transform_3(%arg0: i32, %arg1: i32) -> (i32, i32, i32) {
    %c0_i32 = arith.constant 0 : i32
    %c0_i32_0 = arith.constant 0 : i32
    %c0_i32_1 = arith.constant 0 : i32
    %c0_i32_2 = arith.constant 0 : i32
    return %c0_i32, %c0_i32_0, %c0_i32_1 : i32, i32, i32
  }
  func.func @transform_4(%arg0: i32, %arg1: i32) -> (i32, i32, i32) {
    %c0_i32 = arith.constant 0 : i32
    %c0_i32_0 = arith.constant 0 : i32
    %c0_i32_1 = arith.constant 0 : i32
    %c0_i32_2 = arith.constant 0 : i32
    return %c0_i32, %c0_i32_0, %c0_i32_1 : i32, i32, i32
  }
}

</mosaic_0001>

<llo_original>
// kernel: conv_bn_relu.1
$region0: #{conv_bn_relu.1}
  #allocation0 [shape = 'u32[]', space=smem, size = 0x4, offset = 0x4, fixed_abs, tag = 'smem constant byte address 0x4 - core index']
  #allocation1 [shape = 'u32[144,128]{1,0:T(1,128)}', space=vmem, size = 0x12000, scoped, tag = 'internal scratch']
  %s0 = inlined_call_operand.vmem [shape: bf16[1,1,256,256], index: 0, kind: input, shape index: {}]
  %s1 = inlined_call_operand.vmem [shape: bf16[1,128,256], index: 1, kind: input, shape index: {}]
  %s2 = inlined_call_operand.vmem [shape: f32[1,128,1], index: 2, kind: input, shape index: {}]
  %s3 = inlined_call_operand.vmem [shape: f32[1,128,1], index: 3, kind: input, shape index: {}]
  %s4 = inlined_call_operand.vmem [shape: f32[1,128,256], index: 4, kind: output, shape index: {}]
  %s5 = sld [smem:[#allocation0]]
  $region38: #{conv_bn_relu.1} parent=0
    _
  %s7 = ssub.s32 1, %s5
  %s8 = scalar_select 0, %s7, %s5
  // Predicated region
  $region2: #{conv_bn_relu.1} parent=0 // pred_check
    _
  $region3: #{conv_bn_relu.1} parent=0 // pred_check_branch
    %10 = sbr.rel (0) target = $region5
  $region4: #{conv_bn_relu.1} parent=0 // pred_region
    _
  $region5: #{conv_bn_relu.1} parent=0 // pred_fallthru
    _
  // Predicated region
  $region6: #{conv_bn_relu.1} parent=0 // pred_check
    _
  $region7: #{conv_bn_relu.1} parent=0 // pred_check_branch
    %12 = sbr.rel (0) target = $region9
  $region8: #{conv_bn_relu.1} parent=0 // pred_region
    _
  $region9: #{conv_bn_relu.1} parent=0 // pred_fallthru
    _
  // Predicated region
  $region10: #{conv_bn_relu.1} parent=0 // pred_check
    _
  $region11: #{conv_bn_relu.1} parent=0 // pred_check_branch
    %14 = sbr.rel (0) target = $region13
  $region12: #{conv_bn_relu.1} parent=0 // pred_region
    _
  $region13: #{conv_bn_relu.1} parent=0 // pred_fallthru
    _
  // Predicated region
  $region14: #{conv_bn_relu.1} parent=0 // pred_check
    _
  $region15: #{conv_bn_relu.1} parent=0 // pred_check_branch
    %16 = sbr.rel (0) target = $region17
  $region16: #{conv_bn_relu.1} parent=0 // pred_region
    _
  $region17: #{conv_bn_relu.1} parent=0 // pred_fallthru
    _
  %v17 = vld [vmem:[%s1] sm:$0xff]
  %v18 = vld [vmem:[%s1 + $0x8] sm:$0xff]
  %v19 = vld [vmem:[%s1 + $0x10] sm:$0xff]
  %v20 = vld [vmem:[%s1 + $0x18] sm:$0xff]
  %v21 = vld [vmem:[%s1 + $0x20] sm:$0xff]
  %v22 = vld [vmem:[%s1 + $0x28] sm:$0xff]
  %v23 = vld [vmem:[%s1 + $0x30] sm:$0xff]
  %v24 = vld [vmem:[%s1 + $0x38] sm:$0xff]
  %v25 = vld [vmem:[%s1 + $0x40] sm:$0xff]
  %v26 = vld [vmem:[%s1 + $0x48] sm:$0xff]
  %v27 = vld [vmem:[%s1 + $0x50] sm:$0xff]
  %v28 = vld [vmem:[%s1 + $0x58] sm:$0xff]
  %v29 = vld [vmem:[%s1 + $0x60] sm:$0xff]
  %v30 = vld [vmem:[%s1 + $0x68] sm:$0xff]
  %v31 = vld [vmem:[%s1 + $0x70] sm:$0xff]
  %v32 = vld [vmem:[%s1 + $0x78] sm:$0xff]
  %v33 = vld [vmem:[%s0] sm:$0xff]
  %v34 = vld [vmem:[%s0 + $0x8] sm:$0xff]
  %v35 = vld [vmem:[%s0 + $0x10] sm:$0xff]
  %v36 = vld [vmem:[%s0 + $0x18] sm:$0xff]
  %v37 = vld [vmem:[%s0 + $0x20] sm:$0xff]
  %v38 = vld [vmem:[%s0 + $0x28] sm:$0xff]
  %v39 = vld [vmem:[%s0 + $0x30] sm:$0xff]
  %v40 = vld [vmem:[%s0 + $0x38] sm:$0xff]
  %v41 = vld [vmem:[%s0 + $0x40] sm:$0xff]
  %v42 = vld [vmem:[%s0 + $0x48] sm:$0xff]
  %v43 = vld [vmem:[%s0 + $0x50] sm:$0xff]
  %v44 = vld [vmem:[%s0 + $0x58] sm:$0xff]
  %v45 = vld [vmem:[%s0 + $0x60] sm:$0xff]
  %v46 = vld [vmem:[%s0 + $0x68] sm:$0xff]
  %v47 = vld [vmem:[%s0 + $0x70] sm:$0xff]
  %v48 = vld [vmem:[%s0 + $0x78] sm:$0xff]
  %v49 = vld [vmem:[%s0 + $0x80] sm:$0xff]
  %v50 = vld [vmem:[%s0 + $0x88] sm:$0xff]
  %v51 = vld [vmem:[%s0 + $0x90] sm:$0xff]
  %v52 = vld [vmem:[%s0 + $0x98] sm:$0xff]
  %v53 = vld [vmem:[%s0 + $0xa0] sm:$0xff]
  %v54 = vld [vmem:[%s0 + $0xa8] sm:$0xff]
  %v55 = vld [vmem:[%s0 + $0xb0] sm:$0xff]
  %v56 = vld [vmem:[%s0 + $0xb8] sm:$0xff]
  %v57 = vld [vmem:[%s0 + $0xc0] sm:$0xff]
  %v58 = vld [vmem:[%s0 + $0xc8] sm:$0xff]
  %v59 = vld [vmem:[%s0 + $0xd0] sm:$0xff]
  %v60 = vld [vmem:[%s0 + $0xd8] sm:$0xff]
  %v61 = vld [vmem:[%s0 + $0xe0] sm:$0xff]
  %v62 = vld [vmem:[%s0 + $0xe8] sm:$0xff]
  %v63 = vld [vmem:[%s0 + $0xf0] sm:$0xff]
  %v64 = vld [vmem:[%s0 + $0xf8] sm:$0xff]
  %v81 = vunpack.c.l.b16 %v17
  %v82 = vunpack.c.h.b16 %v17
  %v83 = vunpack.c.l.b16 %v18
  %v84 = vunpack.c.h.b16 %v18
  %v85 = vunpack.c.l.b16 %v19
  %v86 = vunpack.c.h.b16 %v19
  %v87 = vunpack.c.l.b16 %v20
  %v88 = vunpack.c.h.b16 %v20
  %v89 = vunpack.c.l.b16 %v21
  %v90 = vunpack.c.h.b16 %v21
  %v91 = vunpack.c.l.b16 %v22
  %v92 = vunpack.c.h.b16 %v22
  %v93 = vunpack.c.l.b16 %v23
  %v94 = vunpack.c.h.b16 %v23
  %v95 = vunpack.c.l.b16 %v24
  %v96 = vunpack.c.h.b16 %v24
  %v97 = vunpack.c.l.b16 %v25
  %v98 = vunpack.c.h.b16 %v25
  %v99 = vunpack.c.l.b16 %v26
  %v100 = vunpack.c.h.b16 %v26
  %v101 = vunpack.c.l.b16 %v27
  %v102 = vunpack.c.h.b16 %v27
  %v103 = vunpack.c.l.b16 %v28
  %v104 = vunpack.c.h.b16 %v28
  %v105 = vunpack.c.l.b16 %v29
  %v106 = vunpack.c.h.b16 %v29
  %v107 = vunpack.c.l.b16 %v30
  %v108 = vunpack.c.h.b16 %v30
  %v109 = vunpack.c.l.b16 %v31
  %v110 = vunpack.c.h.b16 %v31
  %v111 = vunpack.c.l.b16 %v32
  %v112 = vunpack.c.h.b16 %v32
  %v113 = vpack.c.b16 %v83, %v81
  %v114 = vpack.c.b16 %v84, %v82
  %v115 = vpack.c.b16 %v87, %v85
  %v116 = vpack.c.b16 %v88, %v86
  %v117 = vpack.c.b16 %v91, %v89
  %v118 = vpack.c.b16 %v92, %v90
  %v119 = vpack.c.b16 %v95, %v93
  %v120 = vpack.c.b16 %v96, %v94
  %v121 = vpack.c.b16 %v99, %v97
  %v122 = vpack.c.b16 %v100, %v98
  %v123 = vpack.c.b16 %v103, %v101
  %v124 = vpack.c.b16 %v104, %v102
  %v125 = vpack.c.b16 %v107, %v105
  %v126 = vpack.c.b16 %v108, %v106
  %v127 = vpack.c.b16 %v111, %v109
  %v128 = vpack.c.b16 %v112, %v110
  %v177 = vunpack.c.l.b16 %v33
  %v178 = vunpack.c.h.b16 %v33
  %v179 = vunpack.c.l.b16 %v34
  %v180 = vunpack.c.h.b16 %v34
  %v181 = vunpack.c.l.b16 %v35
  %v182 = vunpack.c.h.b16 %v35
  %v183 = vunpack.c.l.b16 %v36
  %v184 = vunpack.c.h.b16 %v36
  %v185 = vunpack.c.l.b16 %v37
  %v186 = vunpack.c.h.b16 %v37
  %v187 = vunpack.c.l.b16 %v38
  %v188 = vunpack.c.h.b16 %v38
  %v189 = vunpack.c.l.b16 %v39
  %v190 = vunpack.c.h.b16 %v39
  %v191 = vunpack.c.l.b16 %v40
  %v192 = vunpack.c.h.b16 %v40
  %v193 = vunpack.c.l.b16 %v41
  %v194 = vunpack.c.h.b16 %v41
  %v195 = vunpack.c.l.b16 %v42
  %v196 = vunpack.c.h.b16 %v42
  %v197 = vunpack.c.l.b16 %v43
  %v198 = vunpack.c.h.b16 %v43
  %v199 = vunpack.c.l.b16 %v44
  %v200 = vunpack.c.h.b16 %v44
  %v201 = vunpack.c.l.b16 %v45
  %v202 = vunpack.c.h.b16 %v45
  %v203 = vunpack.c.l.b16 %v46
  %v204 = vunpack.c.h.b16 %v46
  %v205 = vunpack.c.l.b16 %v47
  %v206 = vunpack.c.h.b16 %v47
  %v207 = vunpack.c.l.b16 %v48
  %v208 = vunpack.c.h.b16 %v48
  %v209 = vunpack.c.l.b16 %v49
  %v210 = vunpack.c.h.b16 %v49
  %v211 = vunpack.c.l.b16 %v50
  %v212 = vunpack.c.h.b16 %v50
  %v213 = vunpack.c.l.b16 %v51
  %v214 = vunpack.c.h.b16 %v51
  %v215 = vunpack.c.l.b16 %v52
  %v216 = vunpack.c.h.b16 %v52
  %v217 = vunpack.c.l.b16 %v53
  %v218 = vunpack.c.h.b16 %v53
  %v219 = vunpack.c.l.b16 %v54
  %v220 = vunpack.c.h.b16 %v54
  %v221 = vunpack.c.l.b16 %v55
  %v222 = vunpack.c.h.b16 %v55
  %v223 = vunpack.c.l.b16 %v56
  %v224 = vunpack.c.h.b16 %v56
  %v225 = vunpack.c.l.b16 %v57
  %v226 = vunpack.c.h.b16 %v57
  %v227 = vunpack.c.l.b16 %v58
  %v228 = vunpack.c.h.b16 %v58
  %v229 = vunpack.c.l.b16 %v59
  %v230 = vunpack.c.h.b16 %v59
  %v231 = vunpack.c.l.b16 %v60
  %v232 = vunpack.c.h.b16 %v60
  %v233 = vunpack.c.l.b16 %v61
  %v234 = vunpack.c.h.b16 %v61
  %v235 = vunpack.c.l.b16 %v62
  %v236 = vunpack.c.h.b16 %v62
  %v237 = vunpack.c.l.b16 %v63
  %v238 = vunpack.c.h.b16 %v63
  %v239 = vunpack.c.l.b16 %v64
  %v240 = vunpack.c.h.b16 %v64
  %v241 = vpack.c.b16 %v179, %v177
  %v242 = vpack.c.b16 %v180, %v178
  %v243 = vpack.c.b16 %v183, %v181
  %v244 = vpack.c.b16 %v184, %v182
  %v245 = vpack.c.b16 %v187, %v185
  %v246 = vpack.c.b16 %v188, %v186
  %v247 = vpack.c.b16 %v191, %v189
  %v248 = vpack.c.b16 %v192, %v190
  %v249 = vpack.c.b16 %v195, %v193
  %v250 = vpack.c.b16 %v196, %v194
  %v251 = vpack.c.b16 %v199, %v197
  %v252 = vpack.c.b16 %v200, %v198
  %v253 = vpack.c.b16 %v203, %v201
  %v254 = vpack.c.b16 %v204, %v202
  %v255 = vpack.c.b16 %v207, %v205
  %v256 = vpack.c.b16 %v208, %v206
  %v257 = vpack.c.b16 %v211, %v209
  %v258 = vpack.c.b16 %v212, %v210
  %v259 = vpack.c.b16 %v215, %v213
  %v260 = vpack.c.b16 %v216, %v214
  %v261 = vpack.c.b16 %v219, %v217
  %v262 = vpack.c.b16 %v220, %v218
  %v263 = vpack.c.b16 %v223, %v221
  %v264 = vpack.c.b16 %v224, %v222
  %v265 = vpack.c.b16 %v227, %v225
  %v266 = vpack.c.b16 %v228, %v226
  %v267 = vpack.c.b16 %v231, %v229
  %v268 = vpack.c.b16 %v232, %v230
  %v269 = vpack.c.b16 %v235, %v233
  %v270 = vpack.c.b16 %v236, %v234
  %v271 = vpack.c.b16 %v239, %v237
  %v272 = vpack.c.b16 %v240, %v238
  %305 = vmatprep.subr.bf16.mxu0 %v256
  %306 = vmatpush1.bf16.msra.mxu0 %v255
  %307 = vmatprep.subr.bf16.mxu0 %v254
  %308 = vmatpush1.bf16.msra.mxu0 %v253
  %309 = vmatprep.subr.bf16.mxu0 %v252
  %310 = vmatpush1.bf16.msra.mxu0 %v251
  %311 = vmatprep.subr.bf16.mxu0 %v250
  %312 = vmatpush1.bf16.msra.mxu0 %v249
  %313 = vmatprep.subr.bf16.mxu0 %v248
  %314 = vmatpush1.bf16.msra.mxu0 %v247
  %315 = vmatprep.subr.bf16.mxu0 %v246
  %316 = vmatpush1.bf16.msra.mxu0 %v245
  %317 = vmatprep.subr.bf16.mxu0 %v244
  %318 = vmatpush1.bf16.msra.mxu0 %v243
  %319 = vmatprep.subr.bf16.mxu0 %v242
  %320 = vmatpush1.bf16.msra.mxu0 %v241
  %321 = vmatprep.subr.bf16.mxu0 %v272
  %322 = vmatpush2.bf16.msra.mxu0 %v271
  %323 = vmatprep.subr.bf16.mxu0 %v270
  %324 = vmatpush2.bf16.msra.mxu0 %v269
  %325 = vmatprep.subr.bf16.mxu0 %v268
  %326 = vmatpush2.bf16.msra.mxu0 %v267
  %327 = vmatprep.subr.bf16.mxu0 %v266
  %328 = vmatpush2.bf16.msra.mxu0 %v265
  %329 = vmatprep.subr.bf16.mxu0 %v264
  %330 = vmatpush2.bf16.msra.mxu0 %v263
  %331 = vmatprep.subr.bf16.mxu0 %v262
  %332 = vmatpush2.bf16.msra.mxu0 %v261
  %333 = vmatprep.subr.bf16.mxu0 %v260
  %334 = vmatpush2.bf16.msra.mxu0 %v259
  %335 = vmatprep.subr.bf16.mxu0 %v258
  %336 = vmatpush2.bf16.msra.mxu0 %v257
  %337 = vmatprep.mubr.bf16.mxu0 %v114
  %338 = vmatmul.mubr.bf16.gmra.mxu0 %v113
  %v339 = vpop.f32.mrf.mxu0
  %v340 = vadd.f32 0.0, %v339
  %v341 = vpop.f32.mrf.mxu0
  %v342 = vadd.f32 0.0, %v341
  %v343 = vpop.f32.mrf.mxu0
  %v344 = vadd.f32 0.0, %v343
  %v345 = vpop.f32.mrf.mxu0
  %v346 = vadd.f32 0.0, %v345
  %347 = vmatprep.mubr.bf16.mxu0 %v116
  %348 = vmatmul.mubr.bf16.gmra.mxu0 %v115
  %v349 = vpop.f32.mrf.mxu0
  %v350 = vadd.f32 0.0, %v349
  %v351 = vpop.f32.mrf.mxu0
  %v352 = vadd.f32 0.0, %v351
  %v353 = vpop.f32.mrf.mxu0
  %v354 = vadd.f32 0.0, %v353
  %v355 = vpop.f32.mrf.mxu0
  %v356 = vadd.f32 0.0, %v355
  %357 = vmatprep.mubr.bf16.mxu0 %v118
  %358 = vmatmul.mubr.bf16.gmra.mxu0 %v117
  %v359 = vpop.f32.mrf.mxu0
  %v360 = vadd.f32 0.0, %v359
  %v361 = vpop.f32.mrf.mxu0
  %v362 = vadd.f32 0.0, %v361
  %v363 = vpop.f32.mrf.mxu0
  %v364 = vadd.f32 0.0, %v363
  %v365 = vpop.f32.mrf.mxu0
  %v366 = vadd.f32 0.0, %v365
  %367 = vmatprep.mubr.bf16.mxu0 %v120
  %368 = vmatmul.mubr.bf16.gmra.mxu0 %v119
  %v369 = vpop.f32.mrf.mxu0
  %v370 = vadd.f32 0.0, %v369
  %v371 = vpop.f32.mrf.mxu0
  %v372 = vadd.f32 0.0, %v371
  %v373 = vpop.f32.mrf.mxu0
  %v374 = vadd.f32 0.0, %v373
  %v375 = vpop.f32.mrf.mxu0
  %v376 = vadd.f32 0.0, %v375
  %377 = vmatprep.mubr.bf16.mxu0 %v122
  %378 = vmatmul.mubr.bf16.gmra.mxu0 %v121
  %v379 = vpop.f32.mrf.mxu0
  %v380 = vadd.f32 0.0, %v379
  %v381 = vpop.f32.mrf.mxu0
  %v382 = vadd.f32 0.0, %v381
  %v383 = vpop.f32.mrf.mxu0
  %v384 = vadd.f32 0.0, %v383
  %v385 = vpop.f32.mrf.mxu0
  %v386 = vadd.f32 0.0, %v385
  %387 = vmatprep.mubr.bf16.mxu0 %v124
  %388 = vmatmul.mubr.bf16.gmra.mxu0 %v123
  %v389 = vpop.f32.mrf.mxu0
  %v390 = vadd.f32 0.0, %v389
  %v391 = vpop.f32.mrf.mxu0
  %v392 = vadd.f32 0.0, %v391
  %v393 = vpop.f32.mrf.mxu0
  %v394 = vadd.f32 0.0, %v393
  %v395 = vpop.f32.mrf.mxu0
  %v396 = vadd.f32 0.0, %v395
  %397 = vmatprep.mubr.bf16.mxu0 %v126
  %398 = vmatmul.mubr.bf16.gmra.mxu0 %v125
  %v399 = vpop.f32.mrf.mxu0
  %v400 = vadd.f32 0.0, %v399
  %v401 = vpop.f32.mrf.mxu0
  %v402 = vadd.f32 0.0, %v401
  %v403 = vpop.f32.mrf.mxu0
  %v404 = vadd.f32 0.0, %v403
  %v405 = vpop.f32.mrf.mxu0
  %v406 = vadd.f32 0.0, %v405
  %407 = vmatprep.mubr.bf16.mxu0 %v128
  %408 = vmatmul.mubr.bf16.gmra.mxu0 %v127
  %v409 = vpop.f32.mrf.mxu0
  %v410 = vadd.f32 0.0, %v409
  %v411 = vpop.f32.mrf.mxu0
  %v412 = vadd.f32 0.0, %v411
  %v413 = vpop.f32.mrf.mxu0
  %v414 = vadd.f32 0.0, %v413
  %v415 = vpop.f32.mrf.mxu0
  %v416 = vadd.f32 0.0, %v415
  %417 = vdwg.mxu0
  %p418 = scmp.eq.s32.totalorder 0, 0
  // Predicated region
  $region18: #{conv_bn_relu.1} parent=0 // pred_check
    %p419 = pneg %p418
  $region19: #{conv_bn_relu.1} parent=0 // pred_check_branch
    %421 = sbr.rel (%p419) target = $region21
  $region20: #{conv_bn_relu.1} parent=0 // pred_region
    %s422 = smul.u32 0, 32
    %s423 = smul.addr %s422, 8
    %s424 = scalar_lea.vmem %s4, %s423
    %425 = vst [vmem:[%s424] sm:$0xff] %v340
    %426 = vst [vmem:[%s424 + $0x8] sm:$0xff] %v342
    %427 = vst [vmem:[%s424 + $0x10] sm:$0xff] %v344
    %428 = vst [vmem:[%s424 + $0x18] sm:$0xff] %v346
    %429 = vst [vmem:[%s424 + $0x20] sm:$0xff] %v350
    %430 = vst [vmem:[%s424 + $0x28] sm:$0xff] %v352
    %431 = vst [vmem:[%s424 + $0x30] sm:$0xff] %v354
    %432 = vst [vmem:[%s424 + $0x38] sm:$0xff] %v356
    %433 = vst [vmem:[%s424 + $0x40] sm:$0xff] %v360
    %434 = vst [vmem:[%s424 + $0x48] sm:$0xff] %v362
    %435 = vst [vmem:[%s424 + $0x50] sm:$0xff] %v364
    %436 = vst [vmem:[%s424 + $0x58] sm:$0xff] %v366
    %437 = vst [vmem:[%s424 + $0x60] sm:$0xff] %v370
    %438 = vst [vmem:[%s424 + $0x68] sm:$0xff] %v372
    %439 = vst [vmem:[%s424 + $0x70] sm:$0xff] %v374
    %440 = vst [vmem:[%s424 + $0x78] sm:$0xff] %v376
    %441 = vst [vmem:[%s424 + $0x80] sm:$0xff] %v380
    %442 = vst [vmem:[%s424 + $0x88] sm:$0xff] %v382
    %443 = vst [vmem:[%s424 + $0x90] sm:$0xff] %v384
    %444 = vst [vmem:[%s424 + $0x98] sm:$0xff] %v386
    %445 = vst [vmem:[%s424 + $0xa0] sm:$0xff] %v390
    %446 = vst [vmem:[%s424 + $0xa8] sm:$0xff] %v392
    %447 = vst [vmem:[%s424 + $0xb0] sm:$0xff] %v394
    %448 = vst [vmem:[%s424 + $0xb8] sm:$0xff] %v396
    %449 = vst [vmem:[%s424 + $0xc0] sm:$0xff] %v400
    %450 = vst [vmem:[%s424 + $0xc8] sm:$0xff] %v402
    %451 = vst [vmem:[%s424 + $0xd0] sm:$0xff] %v404
    %452 = vst [vmem:[%s424 + $0xd8] sm:$0xff] %v406
    %453 = vst [vmem:[%s424 + $0xe0] sm:$0xff] %v410
    %454 = vst [vmem:[%s424 + $0xe8] sm:$0xff] %v412
    %455 = vst [vmem:[%s424 + $0xf0] sm:$0xff] %v414
    %456 = vst [vmem:[%s424 + $0xf8] sm:$0xff] %v416
  $region21: #{conv_bn_relu.1} parent=0 // pred_fallthru
    _
  %p457 = scmp.ne.s32.totalorder 0, 0
  // Predicated region
  $region22: #{conv_bn_relu.1} parent=0 // pred_check
    %p458 = pneg %p457
  $region23: #{conv_bn_relu.1} parent=0 // pred_check_branch
    %460 = sbr.rel (%p458) target = $region25
  $region24: #{conv_bn_relu.1} parent=0 // pred_region
    %s461 = smul.u32 0, 32
    %s462 = smul.addr %s461, 8
    %s463 = scalar_lea.vmem %s4, %s462
    %v464 = vld [vmem:[%s463] sm:$0xff]
    %v465 = vld [vmem:[%s463 + $0x8] sm:$0xff]
    %v466 = vld [vmem:[%s463 + $0x10] sm:$0xff]
    %v467 = vld [vmem:[%s463 + $0x18] sm:$0xff]
    %v468 = vld [vmem:[%s463 + $0x20] sm:$0xff]
    %v469 = vld [vmem:[%s463 + $0x28] sm:$0xff]
    %v470 = vld [vmem:[%s463 + $0x30] sm:$0xff]
    %v471 = vld [vmem:[%s463 + $0x38] sm:$0xff]
    %v472 = vld [vmem:[%s463 + $0x40] sm:$0xff]
    %v473 = vld [vmem:[%s463 + $0x48] sm:$0xff]
    %v474 = vld [vmem:[%s463 + $0x50] sm:$0xff]
    %v475 = vld [vmem:[%s463 + $0x58] sm:$0xff]
    %v476 = vld [vmem:[%s463 + $0x60] sm:$0xff]
    %v477 = vld [vmem:[%s463 + $0x68] sm:$0xff]
    %v478 = vld [vmem:[%s463 + $0x70] sm:$0xff]
    %v479 = vld [vmem:[%s463 + $0x78] sm:$0xff]
    %v480 = vld [vmem:[%s463 + $0x80] sm:$0xff]
    %v481 = vld [vmem:[%s463 + $0x88] sm:$0xff]
    %v482 = vld [vmem:[%s463 + $0x90] sm:$0xff]
    %v483 = vld [vmem:[%s463 + $0x98] sm:$0xff]
    %v484 = vld [vmem:[%s463 + $0xa0] sm:$0xff]
    %v485 = vld [vmem:[%s463 + $0xa8] sm:$0xff]
    %v486 = vld [vmem:[%s463 + $0xb0] sm:$0xff]
    %v487 = vld [vmem:[%s463 + $0xb8] sm:$0xff]
    %v488 = vld [vmem:[%s463 + $0xc0] sm:$0xff]
    %v489 = vld [vmem:[%s463 + $0xc8] sm:$0xff]
    %v490 = vld [vmem:[%s463 + $0xd0] sm:$0xff]
    %v491 = vld [vmem:[%s463 + $0xd8] sm:$0xff]
    %v492 = vld [vmem:[%s463 + $0xe0] sm:$0xff]
    %v493 = vld [vmem:[%s463 + $0xe8] sm:$0xff]
    %v494 = vld [vmem:[%s463 + $0xf0] sm:$0xff]
    %v495 = vld [vmem:[%s463 + $0xf8] sm:$0xff]
    %v496 = vadd.f32 %v464, %v340
    %v497 = vadd.f32 %v465, %v342
    %v498 = vadd.f32 %v466, %v344
    %v499 = vadd.f32 %v467, %v346
    %v500 = vadd.f32 %v468, %v350
    %v501 = vadd.f32 %v469, %v352
    %v502 = vadd.f32 %v470, %v354
    %v503 = vadd.f32 %v471, %v356
    %v504 = vadd.f32 %v472, %v360
    %v505 = vadd.f32 %v473, %v362
    %v506 = vadd.f32 %v474, %v364
    %v507 = vadd.f32 %v475, %v366
    %v508 = vadd.f32 %v476, %v370
    %v509 = vadd.f32 %v477, %v372
    %v510 = vadd.f32 %v478, %v374
    %v511 = vadd.f32 %v479, %v376
    %v512 = vadd.f32 %v480, %v380
    %v513 = vadd.f32 %v481, %v382
    %v514 = vadd.f32 %v482, %v384
    %v515 = vadd.f32 %v483, %v386
    %v516 = vadd.f32 %v484, %v390
    %v517 = vadd.f32 %v485, %v392
    %v518 = vadd.f32 %v486, %v394
    %v519 = vadd.f32 %v487, %v396
    %v520 = vadd.f32 %v488, %v400
    %v521 = vadd.f32 %v489, %v402
    %v522 = vadd.f32 %v490, %v404
    %v523 = vadd.f32 %v491, %v406
    %v524 = vadd.f32 %v492, %v410
    %v525 = vadd.f32 %v493, %v412
    %v526 = vadd.f32 %v494, %v414
    %v527 = vadd.f32 %v495, %v416
    %528 = vst [vmem:[%s463] sm:$0xff] %v496
    %529 = vst [vmem:[%s463 + $0x8] sm:$0xff] %v497
    %530 = vst [vmem:[%s463 + $0x10] sm:$0xff] %v498
    %531 = vst [vmem:[%s463 + $0x18] sm:$0xff] %v499
    %532 = vst [vmem:[%s463 + $0x20] sm:$0xff] %v500
    %533 = vst [vmem:[%s463 + $0x28] sm:$0xff] %v501
    %534 = vst [vmem:[%s463 + $0x30] sm:$0xff] %v502
    %535 = vst [vmem:[%s463 + $0x38] sm:$0xff] %v503
    %536 = vst [vmem:[%s463 + $0x40] sm:$0xff] %v504
    %537 = vst [vmem:[%s463 + $0x48] sm:$0xff] %v505
    %538 = vst [vmem:[%s463 + $0x50] sm:$0xff] %v506
    %539 = vst [vmem:[%s463 + $0x58] sm:$0xff] %v507
    %540 = vst [vmem:[%s463 + $0x60] sm:$0xff] %v508
    %541 = vst [vmem:[%s463 + $0x68] sm:$0xff] %v509
    %542 = vst [vmem:[%s463 + $0x70] sm:$0xff] %v510
    %543 = vst [vmem:[%s463 + $0x78] sm:$0xff] %v511
    %544 = vst [vmem:[%s463 + $0x80] sm:$0xff] %v512
    %545 = vst [vmem:[%s463 + $0x88] sm:$0xff] %v513
    %546 = vst [vmem:[%s463 + $0x90] sm:$0xff] %v514
    %547 = vst [vmem:[%s463 + $0x98] sm:$0xff] %v515
    %548 = vst [vmem:[%s463 + $0xa0] sm:$0xff] %v516
    %549 = vst [vmem:[%s463 + $0xa8] sm:$0xff] %v517
    %550 = vst [vmem:[%s463 + $0xb0] sm:$0xff] %v518
    %551 = vst [vmem:[%s463 + $0xb8] sm:$0xff] %v519
    %552 = vst [vmem:[%s463 + $0xc0] sm:$0xff] %v520
    %553 = vst [vmem:[%s463 + $0xc8] sm:$0xff] %v521
    %554 = vst [vmem:[%s463 + $0xd0] sm:$0xff] %v522
    %555 = vst [vmem:[%s463 + $0xd8] sm:$0xff] %v523
    %556 = vst [vmem:[%s463 + $0xe0] sm:$0xff] %v524
    %557 = vst [vmem:[%s463 + $0xe8] sm:$0xff] %v525
    %558 = vst [vmem:[%s463 + $0xf0] sm:$0xff] %v526
    %559 = vst [vmem:[%s463 + $0xf8] sm:$0xff] %v527
  $region25: #{conv_bn_relu.1} parent=0 // pred_fallthru
    _
  %p560 = scmp.eq.s32.totalorder 0, 0
  %p561 = pnand %p418, %p560
  %p562 = pneg %p561
  // Predicated region
  $region26: #{conv_bn_relu.1} parent=0 // pred_check
    _
  $region27: #{conv_bn_relu.1} parent=0 // pred_check_branch
    %564 = sbr.rel (%p561) target = $region29
  $region28: #{conv_bn_relu.1} parent=0 // pred_region
    %v565 = vld [vmem:[%s4] sm:$0xff]
    %v566 = vld [vmem:[%s4 + $0x8] sm:$0xff]
    %v567 = vld [vmem:[%s4 + $0x10] sm:$0xff]
    %v568 = vld [vmem:[%s4 + $0x18] sm:$0xff]
    %v569 = vld [vmem:[%s4 + $0x20] sm:$0xff]
    %v570 = vld [vmem:[%s4 + $0x28] sm:$0xff]
    %v571 = vld [vmem:[%s4 + $0x30] sm:$0xff]
    %v572 = vld [vmem:[%s4 + $0x38] sm:$0xff]
    %v573 = vld [vmem:[%s4 + $0x40] sm:$0xff]
    %v574 = vld [vmem:[%s4 + $0x48] sm:$0xff]
    %v575 = vld [vmem:[%s4 + $0x50] sm:$0xff]
    %v576 = vld [vmem:[%s4 + $0x58] sm:$0xff]
    %v577 = vld [vmem:[%s4 + $0x60] sm:$0xff]
    %v578 = vld [vmem:[%s4 + $0x68] sm:$0xff]
    %v579 = vld [vmem:[%s4 + $0x70] sm:$0xff]
    %v580 = vld [vmem:[%s4 + $0x78] sm:$0xff]
    %v581 = vld [vmem:[%s4 + $0x80] sm:$0xff]
    %v582 = vld [vmem:[%s4 + $0x88] sm:$0xff]
    %v583 = vld [vmem:[%s4 + $0x90] sm:$0xff]
    %v584 = vld [vmem:[%s4 + $0x98] sm:$0xff]
    %v585 = vld [vmem:[%s4 + $0xa0] sm:$0xff]
    %v586 = vld [vmem:[%s4 + $0xa8] sm:$0xff]
    %v587 = vld [vmem:[%s4 + $0xb0] sm:$0xff]
    %v588 = vld [vmem:[%s4 + $0xb8] sm:$0xff]
    %v589 = vld [vmem:[%s4 + $0xc0] sm:$0xff]
    %v590 = vld [vmem:[%s4 + $0xc8] sm:$0xff]
    %v591 = vld [vmem:[%s4 + $0xd0] sm:$0xff]
    %v592 = vld [vmem:[%s4 + $0xd8] sm:$0xff]
    %v593 = vld [vmem:[%s4 + $0xe0] sm:$0xff]
    %v594 = vld [vmem:[%s4 + $0xe8] sm:$0xff]
    %v595 = vld [vmem:[%s4 + $0xf0] sm:$0xff]
    %v596 = vld [vmem:[%s4 + $0xf8] sm:$0xff]
    %v597 = vadd.f32 %v565, %v566
    %598 = vadd.xlane.f32.xlu0 %v597
    %v599 = vpop.xlane.xlu0 %598
    %v600 = vadd.f32 %v567, %v568
    %601 = vadd.xlane.f32.xlu0 %v600
    %v602 = vpop.xlane.xlu0 %601
    %v603 = vadd.f32 %v569, %v570
    %604 = vadd.xlane.f32.xlu0 %v603
    %v605 = vpop.xlane.xlu0 %604
    %v606 = vadd.f32 %v571, %v572
    %607 = vadd.xlane.f32.xlu0 %v606
    %v608 = vpop.xlane.xlu0 %607
    %v609 = vadd.f32 %v573, %v574
    %610 = vadd.xlane.f32.xlu0 %v609
    %v611 = vpop.xlane.xlu0 %610
    %v612 = vadd.f32 %v575, %v576
    %613 = vadd.xlane.f32.xlu0 %v612
    %v614 = vpop.xlane.xlu0 %613
    %v615 = vadd.f32 %v577, %v578
    %616 = vadd.xlane.f32.xlu0 %v615
    %v617 = vpop.xlane.xlu0 %616
    %v618 = vadd.f32 %v579, %v580
    %619 = vadd.xlane.f32.xlu0 %v618
    %v620 = vpop.xlane.xlu0 %619
    %v621 = vadd.f32 %v581, %v582
    %622 = vadd.xlane.f32.xlu0 %v621
    %v623 = vpop.xlane.xlu0 %622
    %v624 = vadd.f32 %v583, %v584
    %625 = vadd.xlane.f32.xlu0 %v624
    %v626 = vpop.xlane.xlu0 %625
    %v627 = vadd.f32 %v585, %v586
    %628 = vadd.xlane.f32.xlu0 %v627
    %v629 = vpop.xlane.xlu0 %628
    %v630 = vadd.f32 %v587, %v588
    %631 = vadd.xlane.f32.xlu0 %v630
    %v632 = vpop.xlane.xlu0 %631
    %v633 = vadd.f32 %v589, %v590
    %634 = vadd.xlane.f32.xlu0 %v633
    %v635 = vpop.xlane.xlu0 %634
    %v636 = vadd.f32 %v591, %v592
    %637 = vadd.xlane.f32.xlu0 %v636
    %v638 = vpop.xlane.xlu0 %637
    %v639 = vadd.f32 %v593, %v594
    %640 = vadd.xlane.f32.xlu0 %v639
    %v641 = vpop.xlane.xlu0 %640
    %v642 = vadd.f32 %v595, %v596
    %643 = vadd.xlane.f32.xlu0 %v642
    %v644 = vpop.xlane.xlu0 %643
    %v645 = vadd.f32 %v599, 0.0
    %v646 = vadd.f32 %v602, 0.0
    %v647 = vadd.f32 %v605, 0.0
    %v648 = vadd.f32 %v608, 0.0
    %v649 = vadd.f32 %v611, 0.0
    %v650 = vadd.f32 %v614, 0.0
    %v651 = vadd.f32 %v617, 0.0
    %v652 = vadd.f32 %v620, 0.0
    %v653 = vadd.f32 %v623, 0.0
    %v654 = vadd.f32 %v626, 0.0
    %v655 = vadd.f32 %v629, 0.0
    %v656 = vadd.f32 %v632, 0.0
    %v657 = vadd.f32 %v635, 0.0
    %v658 = vadd.f32 %v638, 0.0
    %v659 = vadd.f32 %v641, 0.0
    %v660 = vadd.f32 %v644, 0.0
    %v661 = vmul.f32 %v645, 0.00390625
    %v662 = vmul.f32 %v646, 0.00390625
    %v663 = vmul.f32 %v647, 0.00390625
    %v664 = vmul.f32 %v648, 0.00390625
    %v665 = vmul.f32 %v649, 0.00390625
    %v666 = vmul.f32 %v650, 0.00390625
    %v667 = vmul.f32 %v651, 0.00390625
    %v668 = vmul.f32 %v652, 0.00390625
    %v669 = vmul.f32 %v653, 0.00390625
    %v670 = vmul.f32 %v654, 0.00390625
    %v671 = vmul.f32 %v655, 0.00390625
    %v672 = vmul.f32 %v656, 0.00390625
    %v673 = vmul.f32 %v657, 0.00390625
    %v674 = vmul.f32 %v658, 0.00390625
    %v675 = vmul.f32 %v659, 0.00390625
    %v676 = vmul.f32 %v660, 0.00390625
    %v677 = vsub.f32 %v565, %v661
    %v678 = vsub.f32 %v566, %v661
    %v679 = vsub.f32 %v567, %v662
    %v680 = vsub.f32 %v568, %v662
    %v681 = vsub.f32 %v569, %v663
    %v682 = vsub.f32 %v570, %v663
    %v683 = vsub.f32 %v571, %v664
    %v684 = vsub.f32 %v572, %v664
    %v685 = vsub.f32 %v573, %v665
    %v686 = vsub.f32 %v574, %v665
    %v687 = vsub.f32 %v575, %v666
    %v688 = vsub.f32 %v576, %v666
    %v689 = vsub.f32 %v577, %v667
    %v690 = vsub.f32 %v578, %v667
    %v691 = vsub.f32 %v579, %v668
    %v692 = vsub.f32 %v580, %v668
    %v693 = vsub.f32 %v581, %v669
    %v694 = vsub.f32 %v582, %v669
    %v695 = vsub.f32 %v583, %v670
    %v696 = vsub.f32 %v584, %v670
    %v697 = vsub.f32 %v585, %v671
    %v698 = vsub.f32 %v586, %v671
    %v699 = vsub.f32 %v587, %v672
    %v700 = vsub.f32 %v588, %v672
    %v701 = vsub.f32 %v589, %v673
    %v702 = vsub.f32 %v590, %v673
    %v703 = vsub.f32 %v591, %v674
    %v704 = vsub.f32 %v592, %v674
    %v705 = vsub.f32 %v593, %v675
    %v706 = vsub.f32 %v594, %v675
    %v707 = vsub.f32 %v595, %v676
    %v708 = vsub.f32 %v596, %v676
    %v709 = vmul.f32 %v677, %v677
    %v710 = vmul.f32 %v678, %v678
    %v711 = vmul.f32 %v679, %v679
    %v712 = vmul.f32 %v680, %v680
    %v713 = vmul.f32 %v681, %v681
    %v714 = vmul.f32 %v682, %v682
    %v715 = vmul.f32 %v683, %v683
    %v716 = vmul.f32 %v684, %v684
    %v717 = vmul.f32 %v685, %v685
    %v718 = vmul.f32 %v686, %v686
    %v719 = vmul.f32 %v687, %v687
    %v720 = vmul.f32 %v688, %v688
    %v721 = vmul.f32 %v689, %v689
    %v722 = vmul.f32 %v690, %v690
    %v723 = vmul.f32 %v691, %v691
    %v724 = vmul.f32 %v692, %v692
    %v725 = vmul.f32 %v693, %v693
    %v726 = vmul.f32 %v694, %v694
    %v727 = vmul.f32 %v695, %v695
    %v728 = vmul.f32 %v696, %v696
    %v729 = vmul.f32 %v697, %v697
    %v730 = vmul.f32 %v698, %v698
    %v731 = vmul.f32 %v699, %v699
    %v732 = vmul.f32 %v700, %v700
    %v733 = vmul.f32 %v701, %v701
    %v734 = vmul.f32 %v702, %v702
    %v735 = vmul.f32 %v703, %v703
    %v736 = vmul.f32 %v704, %v704
    %v737 = vmul.f32 %v705, %v705
    %v738 = vmul.f32 %v706, %v706
    %v739 = vmul.f32 %v707, %v707
    %v740 = vmul.f32 %v708, %v708
    %v741 = vadd.f32 %v709, %v710
    %742 = vadd.xlane.f32.xlu0 %v741
    %v743 = vpop.xlane.xlu0 %742
    %v744 = vadd.f32 %v711, %v712
    %745 = vadd.xlane.f32.xlu0 %v744
    %v746 = vpop.xlane.xlu0 %745
    %v747 = vadd.f32 %v713, %v714
    %748 = vadd.xlane.f32.xlu0 %v747
    %v749 = vpop.xlane.xlu0 %748
    %v750 = vadd.f32 %v715, %v716
    %751 = vadd.xlane.f32.xlu0 %v750
    %v752 = vpop.xlane.xlu0 %751
    %v753 = vadd.f32 %v717, %v718
    %754 = vadd.xlane.f32.xlu0 %v753
    %v755 = vpop.xlane.xlu0 %754
    %v756 = vadd.f32 %v719, %v720
    %757 = vadd.xlane.f32.xlu0 %v756
    %v758 = vpop.xlane.xlu0 %757
    %v759 = vadd.f32 %v721, %v722
    %760 = vadd.xlane.f32.xlu0 %v759
    %v761 = vpop.xlane.xlu0 %760
    %v762 = vadd.f32 %v723, %v724
    %763 = vadd.xlane.f32.xlu0 %v762
    %v764 = vpop.xlane.xlu0 %763
    %v765 = vadd.f32 %v725, %v726
    %766 = vadd.xlane.f32.xlu0 %v765
    %v767 = vpop.xlane.xlu0 %766
    %v768 = vadd.f32 %v727, %v728
    %769 = vadd.xlane.f32.xlu0 %v768
    %v770 = vpop.xlane.xlu0 %769
    %v771 = vadd.f32 %v729, %v730
    %772 = vadd.xlane.f32.xlu0 %v771
    %v773 = vpop.xlane.xlu0 %772
    %v774 = vadd.f32 %v731, %v732
    %775 = vadd.xlane.f32.xlu0 %v774
    %v776 = vpop.xlane.xlu0 %775
    %v777 = vadd.f32 %v733, %v734
    %778 = vadd.xlane.f32.xlu0 %v777
    %v779 = vpop.xlane.xlu0 %778
    %v780 = vadd.f32 %v735, %v736
    %781 = vadd.xlane.f32.xlu0 %v780
    %v782 = vpop.xlane.xlu0 %781
    %v783 = vadd.f32 %v737, %v738
    %784 = vadd.xlane.f32.xlu0 %v783
    %v785 = vpop.xlane.xlu0 %784
    %v786 = vadd.f32 %v739, %v740
    %787 = vadd.xlane.f32.xlu0 %v786
    %v788 = vpop.xlane.xlu0 %787
    %v789 = vadd.f32 %v743, 0.0
    %v790 = vadd.f32 %v746, 0.0
    %v791 = vadd.f32 %v749, 0.0
    %v792 = vadd.f32 %v752, 0.0
    %v793 = vadd.f32 %v755, 0.0
    %v794 = vadd.f32 %v758, 0.0
    %v795 = vadd.f32 %v761, 0.0
    %v796 = vadd.f32 %v764, 0.0
    %v797 = vadd.f32 %v767, 0.0
    %v798 = vadd.f32 %v770, 0.0
    %v799 = vadd.f32 %v773, 0.0
    %v800 = vadd.f32 %v776, 0.0
    %v801 = vadd.f32 %v779, 0.0
    %v802 = vadd.f32 %v782, 0.0
    %v803 = vadd.f32 %v785, 0.0
    %v804 = vadd.f32 %v788, 0.0
    %v805 = vmul.f32 %v789, 0.00390625
    %v806 = vmul.f32 %v790, 0.00390625
    %v807 = vmul.f32 %v791, 0.00390625
    %v808 = vmul.f32 %v792, 0.00390625
    %v809 = vmul.f32 %v793, 0.00390625
    %v810 = vmul.f32 %v794, 0.00390625
    %v811 = vmul.f32 %v795, 0.00390625
    %v812 = vmul.f32 %v796, 0.00390625
    %v813 = vmul.f32 %v797, 0.00390625
    %v814 = vmul.f32 %v798, 0.00390625
    %v815 = vmul.f32 %v799, 0.00390625
    %v816 = vmul.f32 %v800, 0.00390625
    %v817 = vmul.f32 %v801, 0.00390625
    %v818 = vmul.f32 %v802, 0.00390625
    %v819 = vmul.f32 %v803, 0.00390625
    %v820 = vmul.f32 %v804, 0.00390625
    %v821 = vld [vmem:[%s2] sm:$0xff]
    %v822 = vld [vmem:[%s2 + $0x8] sm:$0xff]
    %v823 = vld [vmem:[%s2 + $0x10] sm:$0xff]
    %v824 = vld [vmem:[%s2 + $0x18] sm:$0xff]
    %v825 = vld [vmem:[%s2 + $0x20] sm:$0xff]
    %v826 = vld [vmem:[%s2 + $0x28] sm:$0xff]
    %v827 = vld [vmem:[%s2 + $0x30] sm:$0xff]
    %v828 = vld [vmem:[%s2 + $0x38] sm:$0xff]
    %v829 = vld [vmem:[%s2 + $0x40] sm:$0xff]
    %v830 = vld [vmem:[%s2 + $0x48] sm:$0xff]
    %v831 = vld [vmem:[%s2 + $0x50] sm:$0xff]
    %v832 = vld [vmem:[%s2 + $0x58] sm:$0xff]
    %v833 = vld [vmem:[%s2 + $0x60] sm:$0xff]
    %v834 = vld [vmem:[%s2 + $0x68] sm:$0xff]
    %v835 = vld [vmem:[%s2 + $0x70] sm:$0xff]
    %v836 = vld [vmem:[%s2 + $0x78] sm:$0xff]
    %v837 = vadd.f32 %v805, 1e-05
    %v838 = vadd.f32 %v806, 1e-05
    %v839 = vadd.f32 %v807, 1e-05
    %v840 = vadd.f32 %v808, 1e-05
    %v841 = vadd.f32 %v809, 1e-05
    %v842 = vadd.f32 %v810, 1e-05
    %v843 = vadd.f32 %v811, 1e-05
    %v844 = vadd.f32 %v812, 1e-05
    %v845 = vadd.f32 %v813, 1e-05
    %v846 = vadd.f32 %v814, 1e-05
    %v847 = vadd.f32 %v815, 1e-05
    %v848 = vadd.f32 %v816, 1e-05
    %v849 = vadd.f32 %v817, 1e-05
    %v850 = vadd.f32 %v818, 1e-05
    %v851 = vadd.f32 %v819, 1e-05
    %v852 = vadd.f32 %v820, 1e-05
    %v853 = vrsqrt.pop %v837
    %v854 = vrsqrt.pop %v838
    %v855 = vrsqrt.pop %v839
    %v856 = vrsqrt.pop %v840
    %v857 = vrsqrt.pop %v841
    %v858 = vrsqrt.pop %v842
    %v859 = vrsqrt.pop %v843
    %v860 = vrsqrt.pop %v844
    %v861 = vrsqrt.pop %v845
    %v862 = vrsqrt.pop %v846
    %v863 = vrsqrt.pop %v847
    %v864 = vrsqrt.pop %v848
    %v865 = vrsqrt.pop %v849
    %v866 = vrsqrt.pop %v850
    %v867 = vrsqrt.pop %v851
    %v868 = vrsqrt.pop %v852
    %v869 = vmul.f32 %v821, %v853
    %v870 = vmul.f32 %v822, %v854
    %v871 = vmul.f32 %v823, %v855
    %v872 = vmul.f32 %v824, %v856
    %v873 = vmul.f32 %v825, %v857
    %v874 = vmul.f32 %v826, %v858
    %v875 = vmul.f32 %v827, %v859
    %v876 = vmul.f32 %v828, %v860
    %v877 = vmul.f32 %v829, %v861
    %v878 = vmul.f32 %v830, %v862
    %v879 = vmul.f32 %v831, %v863
    %v880 = vmul.f32 %v832, %v864
    %v881 = vmul.f32 %v833, %v865
    %v882 = vmul.f32 %v834, %v866
    %v883 = vmul.f32 %v835, %v867
    %v884 = vmul.f32 %v836, %v868
    %886 = vset.pattern.permute.xlu0 0
    %887 = vperm.xlu0 %886, %v869
    %v888 = vpop.permute.xlu0 %887
    %891 = vset.pattern.permute.xlu0 0
    %892 = vperm.xlu0 %891, %v870
    %v893 = vpop.permute.xlu0 %892
    %896 = vset.pattern.permute.xlu0 0
    %897 = vperm.xlu0 %896, %v871
    %v898 = vpop.permute.xlu0 %897
    %901 = vset.pattern.permute.xlu0 0
    %902 = vperm.xlu0 %901, %v872
    %v903 = vpop.permute.xlu0 %902
    %906 = vset.pattern.permute.xlu0 0
    %907 = vperm.xlu0 %906, %v873
    %v908 = vpop.permute.xlu0 %907
    %911 = vset.pattern.permute.xlu0 0
    %912 = vperm.xlu0 %911, %v874
    %v913 = vpop.permute.xlu0 %912
    %916 = vset.pattern.permute.xlu0 0
    %917 = vperm.xlu0 %916, %v875
    %v918 = vpop.permute.xlu0 %917
    %921 = vset.pattern.permute.xlu0 0
    %922 = vperm.xlu0 %921, %v876
    %v923 = vpop.permute.xlu0 %922
    %926 = vset.pattern.permute.xlu0 0
    %927 = vperm.xlu0 %926, %v877
    %v928 = vpop.permute.xlu0 %927
    %931 = vset.pattern.permute.xlu0 0
    %932 = vperm.xlu0 %931, %v878
    %v933 = vpop.permute.xlu0 %932
    %936 = vset.pattern.permute.xlu0 0
    %937 = vperm.xlu0 %936, %v879
    %v938 = vpop.permute.xlu0 %937
    %941 = vset.pattern.permute.xlu0 0
    %942 = vperm.xlu0 %941, %v880
    %v943 = vpop.permute.xlu0 %942
    %946 = vset.pattern.permute.xlu0 0
    %947 = vperm.xlu0 %946, %v881
    %v948 = vpop.permute.xlu0 %947
    %951 = vset.pattern.permute.xlu0 0
    %952 = vperm.xlu0 %951, %v882
    %v953 = vpop.permute.xlu0 %952
    %956 = vset.pattern.permute.xlu0 0
    %957 = vperm.xlu0 %956, %v883
    %v958 = vpop.permute.xlu0 %957
    %961 = vset.pattern.permute.xlu0 0
    %962 = vperm.xlu0 %961, %v884
    %v963 = vpop.permute.xlu0 %962
    %v965 = vmul.f32 %v677, %v888
    %v966 = vmul.f32 %v678, %v888
    %v967 = vmul.f32 %v679, %v893
    %v968 = vmul.f32 %v680, %v893
    %v969 = vmul.f32 %v681, %v898
    %v970 = vmul.f32 %v682, %v898
    %v971 = vmul.f32 %v683, %v903
    %v972 = vmul.f32 %v684, %v903
    %v973 = vmul.f32 %v685, %v908
    %v974 = vmul.f32 %v686, %v908
    %v975 = vmul.f32 %v687, %v913
    %v976 = vmul.f32 %v688, %v913
    %v977 = vmul.f32 %v689, %v918
    %v978 = vmul.f32 %v690, %v918
    %v979 = vmul.f32 %v691, %v923
    %v980 = vmul.f32 %v692, %v923
    %v981 = vmul.f32 %v693, %v928
    %v982 = vmul.f32 %v694, %v928
    %v983 = vmul.f32 %v695, %v933
    %v984 = vmul.f32 %v696, %v933
    %v985 = vmul.f32 %v697, %v938
    %v986 = vmul.f32 %v698, %v938
    %v987 = vmul.f32 %v699, %v943
    %v988 = vmul.f32 %v700, %v943
    %v989 = vmul.f32 %v701, %v948
    %v990 = vmul.f32 %v702, %v948
    %v991 = vmul.f32 %v703, %v953
    %v992 = vmul.f32 %v704, %v953
    %v993 = vmul.f32 %v705, %v958
    %v994 = vmul.f32 %v706, %v958
    %v995 = vmul.f32 %v707, %v963
    %v996 = vmul.f32 %v708, %v963
    %v997 = vld [vmem:[%s3] sm:$0xff]
    %v998 = vld [vmem:[%s3 + $0x8] sm:$0xff]
    %v999 = vld [vmem:[%s3 + $0x10] sm:$0xff]
    %v1000 = vld [vmem:[%s3 + $0x18] sm:$0xff]
    %v1001 = vld [vmem:[%s3 + $0x20] sm:$0xff]
    %v1002 = vld [vmem:[%s3 + $0x28] sm:$0xff]
    %v1003 = vld [vmem:[%s3 + $0x30] sm:$0xff]
    %v1004 = vld [vmem:[%s3 + $0x38] sm:$0xff]
    %v1005 = vld [vmem:[%s3 + $0x40] sm:$0xff]
    %v1006 = vld [vmem:[%s3 + $0x48] sm:$0xff]
    %v1007 = vld [vmem:[%s3 + $0x50] sm:$0xff]
    %v1008 = vld [vmem:[%s3 + $0x58] sm:$0xff]
    %v1009 = vld [vmem:[%s3 + $0x60] sm:$0xff]
    %v1010 = vld [vmem:[%s3 + $0x68] sm:$0xff]
    %v1011 = vld [vmem:[%s3 + $0x70] sm:$0xff]
    %v1012 = vld [vmem:[%s3 + $0x78] sm:$0xff]
    %1014 = vset.pattern.permute.xlu0 0
    %1015 = vperm.xlu0 %1014, %v997
    %v1016 = vpop.permute.xlu0 %1015
    %1019 = vset.pattern.permute.xlu0 0
    %1020 = vperm.xlu0 %1019, %v998
    %v1021 = vpop.permute.xlu0 %1020
    %1024 = vset.pattern.permute.xlu0 0
    %1025 = vperm.xlu0 %1024, %v999
    %v1026 = vpop.permute.xlu0 %1025
    %1029 = vset.pattern.permute.xlu0 0
    %1030 = vperm.xlu0 %1029, %v1000
    %v1031 = vpop.permute.xlu0 %1030
    %1034 = vset.pattern.permute.xlu0 0
    %1035 = vperm.xlu0 %1034, %v1001
    %v1036 = vpop.permute.xlu0 %1035
    %1039 = vset.pattern.permute.xlu0 0
    %1040 = vperm.xlu0 %1039, %v1002
    %v1041 = vpop.permute.xlu0 %1040
    %1044 = vset.pattern.permute.xlu0 0
    %1045 = vperm.xlu0 %1044, %v1003
    %v1046 = vpop.permute.xlu0 %1045
    %1049 = vset.pattern.permute.xlu0 0
    %1050 = vperm.xlu0 %1049, %v1004
    %v1051 = vpop.permute.xlu0 %1050
    %1054 = vset.pattern.permute.xlu0 0
    %1055 = vperm.xlu0 %1054, %v1005
    %v1056 = vpop.permute.xlu0 %1055
    %1059 = vset.pattern.permute.xlu0 0
    %1060 = vperm.xlu0 %1059, %v1006
    %v1061 = vpop.permute.xlu0 %1060
    %1064 = vset.pattern.permute.xlu0 0
    %1065 = vperm.xlu0 %1064, %v1007
    %v1066 = vpop.permute.xlu0 %1065
    %1069 = vset.pattern.permute.xlu0 0
    %1070 = vperm.xlu0 %1069, %v1008
    %v1071 = vpop.permute.xlu0 %1070
    %1074 = vset.pattern.permute.xlu0 0
    %1075 = vperm.xlu0 %1074, %v1009
    %v1076 = vpop.permute.xlu0 %1075
    %1079 = vset.pattern.permute.xlu0 0
    %1080 = vperm.xlu0 %1079, %v1010
    %v1081 = vpop.permute.xlu0 %1080
    %1084 = vset.pattern.permute.xlu0 0
    %1085 = vperm.xlu0 %1084, %v1011
    %v1086 = vpop.permute.xlu0 %1085
    %1089 = vset.pattern.permute.xlu0 0
    %1090 = vperm.xlu0 %1089, %v1012
    %v1091 = vpop.permute.xlu0 %1090
    %v1093 = vadd.f32 %v965, %v1016
    %v1094 = vadd.f32 %v966, %v1016
    %v1095 = vadd.f32 %v967, %v1021
    %v1096 = vadd.f32 %v968, %v1021
    %v1097 = vadd.f32 %v969, %v1026
    %v1098 = vadd.f32 %v970, %v1026
    %v1099 = vadd.f32 %v971, %v1031
    %v1100 = vadd.f32 %v972, %v1031
    %v1101 = vadd.f32 %v973, %v1036
    %v1102 = vadd.f32 %v974, %v1036
    %v1103 = vadd.f32 %v975, %v1041
    %v1104 = vadd.f32 %v976, %v1041
    %v1105 = vadd.f32 %v977, %v1046
    %v1106 = vadd.f32 %v978, %v1046
    %v1107 = vadd.f32 %v979, %v1051
    %v1108 = vadd.f32 %v980, %v1051
    %v1109 = vadd.f32 %v981, %v1056
    %v1110 = vadd.f32 %v982, %v1056
    %v1111 = vadd.f32 %v983, %v1061
    %v1112 = vadd.f32 %v984, %v1061
    %v1113 = vadd.f32 %v985, %v1066
    %v1114 = vadd.f32 %v986, %v1066
    %v1115 = vadd.f32 %v987, %v1071
    %v1116 = vadd.f32 %v988, %v1071
    %v1117 = vadd.f32 %v989, %v1076
    %v1118 = vadd.f32 %v990, %v1076
    %v1119 = vadd.f32 %v991, %v1081
    %v1120 = vadd.f32 %v992, %v1081
    %v1121 = vadd.f32 %v993, %v1086
    %v1122 = vadd.f32 %v994, %v1086
    %v1123 = vadd.f32 %v995, %v1091
    %v1124 = vadd.f32 %v996, %v1091
    %v1125 = vmax.f32 %v1093, 0.0
    %v1126 = vmax.f32 %v1094, 0.0
    %v1127 = vmax.f32 %v1095, 0.0
    %v1128 = vmax.f32 %v1096, 0.0
    %v1129 = vmax.f32 %v1097, 0.0
    %v1130 = vmax.f32 %v1098, 0.0
    %v1131 = vmax.f32 %v1099, 0.0
    %v1132 = vmax.f32 %v1100, 0.0
    %v1133 = vmax.f32 %v1101, 0.0
    %v1134 = vmax.f32 %v1102, 0.0
    %v1135 = vmax.f32 %v1103, 0.0
    %v1136 = vmax.f32 %v1104, 0.0
    %v1137 = vmax.f32 %v1105, 0.0
    %v1138 = vmax.f32 %v1106, 0.0
    %v1139 = vmax.f32 %v1107, 0.0
    %v1140 = vmax.f32 %v1108, 0.0
    %v1141 = vmax.f32 %v1109, 0.0
    %v1142 = vmax.f32 %v1110, 0.0
    %v1143 = vmax.f32 %v1111, 0.0
    %v1144 = vmax.f32 %v1112, 0.0
    %v1145 = vmax.f32 %v1113, 0.0
    %v1146 = vmax.f32 %v1114, 0.0
    %v1147 = vmax.f32 %v1115, 0.0
    %v1148 = vmax.f32 %v1116, 0.0
    %v1149 = vmax.f32 %v1117, 0.0
    %v1150 = vmax.f32 %v1118, 0.0
    %v1151 = vmax.f32 %v1119, 0.0
    %v1152 = vmax.f32 %v1120, 0.0
    %v1153 = vmax.f32 %v1121, 0.0
    %v1154 = vmax.f32 %v1122, 0.0
    %v1155 = vmax.f32 %v1123, 0.0
    %v1156 = vmax.f32 %v1124, 0.0
    %1157 = vst [vmem:[%s4] sm:$0xff] %v1125
    %1158 = vst [vmem:[%s4 + $0x8] sm:$0xff] %v1126
    %1159 = vst [vmem:[%s4 + $0x10] sm:$0xff] %v1127
    %1160 = vst [vmem:[%s4 + $0x18] sm:$0xff] %v1128
    %1161 = vst [vmem:[%s4 + $0x20] sm:$0xff] %v1129
    %1162 = vst [vmem:[%s4 + $0x28] sm:$0xff] %v1130
    %1163 = vst [vmem:[%s4 + $0x30] sm:$0xff] %v1131
    %1164 = vst [vmem:[%s4 + $0x38] sm:$0xff] %v1132
    %1165 = vst [vmem:[%s4 + $0x40] sm:$0xff] %v1133
    %1166 = vst [vmem:[%s4 + $0x48] sm:$0xff] %v1134
    %1167 = vst [vmem:[%s4 + $0x50] sm:$0xff] %v1135
    %1168 = vst [vmem:[%s4 + $0x58] sm:$0xff] %v1136
    %1169 = vst [vmem:[%s4 + $0x60] sm:$0xff] %v1137
    %1170 = vst [vmem:[%s4 + $0x68] sm:$0xff] %v1138
    %1171 = vst [vmem:[%s4 + $0x70] sm:$0xff] %v1139
    %1172 = vst [vmem:[%s4 + $0x78] sm:$0xff] %v1140
    %1173 = vst [vmem:[%s4 + $0x80] sm:$0xff] %v1141
    %1174 = vst [vmem:[%s4 + $0x88] sm:$0xff] %v1142
    %1175 = vst [vmem:[%s4 + $0x90] sm:$0xff] %v1143
    %1176 = vst [vmem:[%s4 + $0x98] sm:$0xff] %v1144
    %1177 = vst [vmem:[%s4 + $0xa0] sm:$0xff] %v1145
    %1178 = vst [vmem:[%s4 + $0xa8] sm:$0xff] %v1146
    %1179 = vst [vmem:[%s4 + $0xb0] sm:$0xff] %v1147
    %1180 = vst [vmem:[%s4 + $0xb8] sm:$0xff] %v1148
    %1181 = vst [vmem:[%s4 + $0xc0] sm:$0xff] %v1149
    %1182 = vst [vmem:[%s4 + $0xc8] sm:$0xff] %v1150
    %1183 = vst [vmem:[%s4 + $0xd0] sm:$0xff] %v1151
    %1184 = vst [vmem:[%s4 + $0xd8] sm:$0xff] %v1152
    %1185 = vst [vmem:[%s4 + $0xe0] sm:$0xff] %v1153
    %1186 = vst [vmem:[%s4 + $0xe8] sm:$0xff] %v1154
    %1187 = vst [vmem:[%s4 + $0xf0] sm:$0xff] %v1155
    %1188 = vst [vmem:[%s4 + $0xf8] sm:$0xff] %v1156
  $region29: #{conv_bn_relu.1} parent=0 // pred_fallthru
    _
  // Predicated region
  $region30: #{conv_bn_relu.1} parent=0 // pred_check
    _
  $region31: #{conv_bn_relu.1} parent=0 // pred_check_branch
    %1190 = sbr.rel (0) target = $region33
  $region32: #{conv_bn_relu.1} parent=0 // pred_region
    _
  $region33: #{conv_bn_relu.1} parent=0 // pred_fallthru
    _
  // Predicated region
  $region34: #{conv_bn_relu.1} parent=0 // pred_check
    _
  $region35: #{conv_bn_relu.1} parent=0 // pred_check_branch
    %1192 = sbr.rel (0) target = $region37
  $region36: #{conv_bn_relu.1} parent=0 // pred_region
    _
  $region37: #{conv_bn_relu.1} parent=0 // pred_fallthru
    _

</llo_original>
